<compile_context>
chip_gen: v5e
topology: v5e:2x2
jax: 0.10.0
libtpu: 0.0.40
codegen_flags: <defaults>
</compile_context>

<pallas_src>
import numpy as np
import jax
import jax.numpy as jnp
from jax.experimental import pallas as pl
from jax.experimental.pallas import tpu as pltpu

try:  # perf review: the pure-Python Hungarian dominates wall clock at real sizes
    from scipy.optimize import linear_sum_assignment as _scipy_lsa
except Exception:  # scipy optional; fall back to the in-script solver
    _scipy_lsa = None

# ---- matcher hyper-parameters ------------------------------------------------------
FOCAL_ALPHA = 0.25
FOCAL_GAMMA = 2.0          # fixed at 2 -> squares in-kernel (no jnp.power)
COST_CLASS = 2.0
COST_BBOX = 5.0
COST_GIOU = 2.0
EPS = 1e-8                 # focal log epsilon (matches PyTorch 1e-08)
EPS_AREA = 1e-7            # GIoU denominator guard (degenerate / padded boxes)


def _cdiv(a, b):
    return -(-a // b)


# ------------------------------- Pallas kernel --------------------------------------
def _cost_kernel(glogit_ref, pbox_ref, recip_ref, tnorm_ref, tbox_ref, c_ref):
    # Shapes (batch dim squeezed by BlockSpec; T = lane tile over HW):
    #   glogit_ref (NT_pad, T)   raw logits already gathered at each target's class
    #   pbox_ref   (4, T)        predicted boxes xyxy (unnormalized)
    #   recip_ref  (4, 1)        1 / image_size_xyxy
    #   tnorm_ref  (NT_pad, 4)   normalized target boxes
    #   tbox_ref   (NT_pad, 4)   unnormalized target boxes
    #   c_ref      (NT_pad, T)   output cost-matrix block (lane-dense)
    #
    # Focal class cost directly on the gathered rows.  Padded target rows /
    # padded HW columns produce finite garbage by design; the host slices
    # [:nt, :hw] and the kernel NEVER reduces over NT_pad or HW.
    x = glogit_ref[...]                             # (NT_pad, T)
    p = jax.nn.sigmoid(x)                           # EUP (fused, raw logits in)
    q = 1.0 - p
    # gamma == 2.0 -> explicit squares on the VPU
    neg = (1.0 - FOCAL_ALPHA) * (p * p) * (-jnp.log(q + EPS))
    pos = FOCAL_ALPHA * (q * q) * (-jnp.log(p + EPS))
    cost_class = pos - neg                          # (NT_pad, T) — already "gathered"

    pb = pbox_ref[...]                              # (4, T)
    pbn = pb * recip_ref[...]                       # normalized pred boxes (multiply)
    x1o, y1o, x2o, y2o = pb[0:1, :], pb[1:2, :], pb[2:3, :], pb[3:4, :]   # (1, T)

    tn = tnorm_ref[...]                             # (NT_pad, 4)
    tb = tbox_ref[...]
    x1t, y1t, x2t, y2t = tb[:, 0:1], tb[:, 1:2], tb[:, 2:3], tb[:, 3:4]   # (NT_pad,1)

    # L1 cdist on normalized boxes -> (NT_pad, T)
    cost_bbox = (jnp.abs(tn[:, 0:1] - pbn[0:1, :]) +
                 jnp.abs(tn[:, 1:2] - pbn[1:2, :]) +
                 jnp.abs(tn[:, 2:3] - pbn[2:3, :]) +
                 jnp.abs(tn[:, 3:4] - pbn[3:4, :]))

    # generalized IoU on unnormalized boxes
    area_o = (x2o - x1o) * (y2o - y1o)              # (1, T)
    area_t = (x2t - x1t) * (y2t - y1t)              # (NT_pad, 1)
    iw = jnp.maximum(jnp.minimum(x2o, x2t) - jnp.maximum(x1o, x1t), 0.0)
    ih = jnp.maximum(jnp.minimum(y2o, y2t) - jnp.maximum(y1o, y1t), 0.0)
    inter = iw * ih
    union = area_o + area_t - inter
    ew = jnp.maximum(jnp.maximum(x2o, x2t) - jnp.minimum(x1o, x1t), 0.0)
    eh = jnp.maximum(jnp.maximum(y2o, y2t) - jnp.minimum(y1o, y1t), 0.0)
    enclose = ew * eh
    iou = inter / (union + EPS_AREA)
    giou = iou - (enclose - union) / (enclose + EPS_AREA)

    c_ref[...] = (COST_BBOX * cost_bbox + COST_CLASS * cost_class
                  + COST_GIOU * (-giou))


def compute_cost_matrices(glogits, boxes, recip_img, tnorm, tbox, tile):
    """Batched cost matrices from target-gathered logits.

    glogits   (bs, NT_pad, HW_pad)  raw logits gathered at target classes
    boxes     (bs, 4, HW_pad)       pred boxes xyxy
    recip_img (bs, 4, 1)            1 / image_size_xyxy
    tnorm     (bs, NT_pad, 4)       tgt boxes / image_size_xyxy_tgt
    tbox      (bs, NT_pad, 4)
    -> C_all  (bs, NT_pad, HW_pad)
    """
    bs, nt_pad, hw_pad = glogits.shape
    grid = (bs, hw_pad // tile)

    elems = bs * nt_pad * hw_pad
    cost = pl.CostEstimate(
        flops=60 * elems,                        # focal + L1 + GIoU per output element
        transcendentals=3 * elems,               # sigmoid + 2 logs
        bytes_accessed=4 * (2 * elems + bs * 4 * hw_pad + bs * (nt_pad * 8 + 4)),
    )

    return pl.pallas_call(
        _cost_kernel,
        out_shape=jax.ShapeDtypeStruct((bs, nt_pad, hw_pad), jnp.float32),
        grid=grid,
        in_specs=[
            pl.BlockSpec((None, nt_pad, tile), lambda b, t: (b, 0, t)),   # gathered logits
            pl.BlockSpec((None, 4, tile), lambda b, t: (b, 0, t)),        # pred boxes
            pl.BlockSpec((None, 4, 1), lambda b, t: (b, 0, 0)),           # recip img size
            pl.BlockSpec((None, nt_pad, 4), lambda b, t: (b, 0, 0)),      # tgt norm boxes
            pl.BlockSpec((None, nt_pad, 4), lambda b, t: (b, 0, 0)),      # tgt boxes
        ],
        out_specs=pl.BlockSpec((None, nt_pad, tile), lambda b, t: (b, 0, t)),
        compiler_params=pltpu.CompilerParams(
            dimension_semantics=("parallel", "parallel"),   # v7x: shard over both TCs
            vmem_limit_bytes=32 << 20),                     # v5e default is only 16 MiB
        cost_estimate=cost,
    )(glogits, boxes, recip_img, tnorm, tbox)


def _choose_tile(hw, nt_pad, bs):
    """Lane-tile over HW.

    Bigger tiles amortize the ~0.35 us per-grid-step overhead, but every live
    (NT_pad, tile) f32 intermediate in the GIoU chain costs NT_pad*tile/1024
    vregs, so cap the tile to keep ~8 live temporaries inside the 64-vreg file.
    Prefer a tile that divides HW exactly so no jnp.pad copy is needed.
    """
    cap = 1024 if nt_pad <= 8 else 512
    candidates = [t for t in (1024, 512, 256, 128) if t <= cap]
    tile, hw_pad = None, None
    for t in candidates:                       # common case: HW multiple of 128
        if hw % t == 0:
            tile, hw_pad = t, hw
            break
    if tile is None:                           # ragged HW (rare): pad to 128 multiple
        hw_pad = 128 * _cdiv(hw, 128)
        for t in candidates:
            if hw_pad % t == 0:
                tile = t
                break
    if bs == 1:                                # v7x megacore: keep >=2 parallel steps
        while tile > 128 and hw_pad // tile < 2:
            tile //= 2
    return tile, hw_pad


# ------------------------ pure-JAX reference (debug only) ---------------------------
def _cost_reference(out_prob, out_bbox, tgt_ids, tgt_bbox, img_out, img_tgt):
    p = out_prob
    neg = (1.0 - FOCAL_ALPHA) * jnp.power(p, FOCAL_GAMMA) * (-jnp.log(1.0 - p + EPS))
    pos = FOCAL_ALPHA * jnp.power(1.0 - p, FOCAL_GAMMA) * (-jnp.log(p + EPS))
    cost_class = (pos - neg)[:, tgt_ids]
    obn = out_bbox / img_out[None, :]
    tbn = tgt_bbox / img_tgt
    cost_bbox = jnp.sum(jnp.abs(obn[:, None, :] - tbn[None, :, :]), axis=-1)
    area_o = (out_bbox[:, 2] - out_bbox[:, 0]) * (out_bbox[:, 3] - out_bbox[:, 1])
    area_t = (tgt_bbox[:, 2] - tgt_bbox[:, 0]) * (tgt_bbox[:, 3] - tgt_bbox[:, 1])
    lt = jnp.maximum(out_bbox[:, None, :2], tgt_bbox[None, :, :2])
    rb = jnp.minimum(out_bbox[:, None, 2:], tgt_bbox[None, :, 2:])
    wh = jnp.clip(rb - lt, 0.0)
    inter = wh[..., 0] * wh[..., 1]
    union = area_o[:, None] + area_t[None, :] - inter
    iou = inter / union
    lt2 = jnp.minimum(out_bbox[:, None, :2], tgt_bbox[None, :, :2])
    rb2 = jnp.maximum(out_bbox[:, None, 2:], tgt_bbox[None, :, 2:])
    wh2 = jnp.clip(rb2 - lt2, 0.0)
    enclose = wh2[..., 0] * wh2[..., 1]
    giou = iou - (enclose - union) / enclose
    return COST_BBOX * cost_bbox + COST_CLASS * cost_class + COST_GIOU * (-giou)


def _validate_against_reference(c_host, outputs, targets):
    pred_logits = outputs["pred_logits"]
    pred_boxes = outputs["pred_boxes"]
    bs, k, h, w = pred_logits.shape
    hw = h * w
    batch_out_prob = jax.nn.sigmoid(
        jnp.transpose(pred_logits, (0, 2, 3, 1)).reshape(bs, hw, k))
    batch_out_bbox = jnp.transpose(pred_boxes, (0, 2, 3, 1)).reshape(bs, hw, 4)
    for i, t in enumerate(targets):
        nt = int(np.asarray(t["labels"]).shape[0])
        if nt == 0:
            continue
        c_ref = _cost_reference(batch_out_prob[i], batch_out_bbox[i],
                                jnp.asarray(t["labels"]),
                                jnp.asarray(t["boxes_xyxy"], jnp.float32),
                                jnp.asarray(t["image_size_xyxy"], jnp.float32),
                                jnp.asarray(t["image_size_xyxy_tgt"], jnp.float32))
        np.testing.assert_allclose(c_host[i, :nt, :hw].T, np.asarray(c_ref),
                                   rtol=2e-3, atol=2e-3)


# ------------------------ Hungarian assignment (host) -------------------------------
# TODO(synk): Hungarian assignment (scipy.optimize.linear_sum_assignment) is an
# inherently sequential host algorithm with no clean Pallas equivalent; it is solved
# on host (scipy if installed, NumPy/Python fallback) on the kernel cost matrices.
def _hungarian_min(cost):
    """cost: (n, m), n <= m.  Returns assign[i] = column matched to row i."""
    n, m = cost.shape
    INF = float("inf")
    u = [0.0] * (n + 1)
    v = [0.0] * (m + 1)
    p = [0] * (m + 1)
    way = [0] * (m + 1)
    for i in range(1, n + 1):
        p[0] = i
        j0 = 0
        minv = [INF] * (m + 1)
        used = [False] * (m + 1)
        while True:
            used[j0] = True
            i0 = p[j0]
            delta = INF
            j1 = 0
            for j in range(1, m + 1):
                if not used[j]:
                    cur = cost[i0 - 1, j - 1] - u[i0] - v[j]
                    if cur < minv[j]:
                        minv[j] = cur
                        way[j] = j0
                    if minv[j] < delta:
                        delta = minv[j]
                        j1 = j
            for j in range(m + 1):
                if used[j]:
                    u[p[j]] += delta
                    v[j] -= delta
                else:
                    minv[j] -= delta
            j0 = j1
            if p[j0] == 0:
                break
        while True:
            j1 = way[j0]
            p[j0] = p[j1]
            j0 = j1
            if j0 == 0:
                break
    assign = [-1] * n
    for j in range(1, m + 1):
        if p[j] != 0:
            assign[p[j] - 1] = j - 1
    return assign


def linear_sum_assignment_np(C):
    """Same semantics as scipy.optimize.linear_sum_assignment (rectangular)."""
    C = np.asarray(C, dtype=np.float64)
    n_rows, n_cols = C.shape
    if n_rows >= n_cols:
        assign = _hungarian_min(C.T)                      # target -> prediction
        pairs = sorted((assign[t], t) for t in range(n_cols))
    else:
        assign = _hungarian_min(C)
        pairs = sorted((r, assign[r]) for r in range(n_rows))
    row_ind = np.array([a for a, _ in pairs], dtype=np.int64)
    col_ind = np.array([b for _, b in pairs], dtype=np.int64)
    return row_ind, col_ind


def linear_sum_assignment(C):
    if _scipy_lsa is not None:
        r, c = _scipy_lsa(np.asarray(C))
        return np.asarray(r, np.int64), np.asarray(c, np.int64)
    return linear_sum_assignment_np(C)


# ------------------------------ matcher forward --------------------------------------
def _prepare_targets_np(targets, nt_pad):
    """Pack labels / target boxes / reciprocal image sizes in NumPy.

    One device transfer per packed array (no per-image jnp .at[].set dispatches).
    """
    bs = len(targets)
    labels = np.zeros((bs, nt_pad), np.int32)
    tnorm = np.zeros((bs, nt_pad, 4), np.float32)
    tbox = np.zeros((bs, nt_pad, 4), np.float32)
    recip = np.ones((bs, 4, 1), np.float32)
    for i, t in enumerate(targets):
        recip[i, :, 0] = 1.0 / np.asarray(t["image_size_xyxy"], np.float32)
        nt = int(np.asarray(t["labels"]).shape[0])
        if nt == 0:
            continue
        boxes = np.asarray(t["boxes_xyxy"], np.float32)
        labels[i, :nt] = np.asarray(t["labels"], np.int32)
        tbox[i, :nt] = boxes
        tnorm[i, :nt] = boxes / np.asarray(t["image_size_xyxy_tgt"], np.float32)
    return labels, tnorm, tbox, recip


def min_cost_matcher_forward(outputs, targets, validate=False):
    pred_logits = outputs["pred_logits"]     # (bs, K, H, W)  NCHW
    pred_boxes = outputs["pred_boxes"]       # (bs, 4, H, W)
    bs, k, h, w = pred_logits.shape
    hw = h * w

    nts = [int(np.asarray(t["labels"]).shape[0]) for t in targets]
    nt_max = max(nts) if nts else 0
    if nt_max == 0:
        return [(jnp.asarray([], jnp.int32), jnp.asarray([], jnp.int32))
                for _ in range(bs)]
    nt_pad = max(8, _cdiv(nt_max, 8) * 8)          # sublane multiple

    tile, hw_pad = _choose_tile(hw, nt_pad, bs)

    labels_np, tnorm_np, tbox_np, recip_np = _prepare_targets_np(targets, nt_pad)
    labels = jnp.asarray(labels_np)                # (bs, nt_pad) int32
    tnorm = jnp.asarray(tnorm_np)
    tbox = jnp.asarray(tbox_np)
    recip_img = jnp.asarray(recip_np)

    # NCHW already has the spatial dims last -> flatten only (no transpose), then
    # gather ONLY the NT_pad target-class rows of RAW logits.  The one-hot select
    # commutes exactly with sigmoid/focal, so doing it first means the kernel's
    # EUP work and logits HBM traffic are NT_pad rows instead of K rows.
    logits = jnp.asarray(pred_logits, jnp.float32).reshape(bs, k, hw)
    glogits = jnp.take_along_axis(logits, labels[:, :, None], axis=1)  # (bs,nt_pad,hw)
    boxes = jnp.asarray(pred_boxes, jnp.float32).reshape(bs, 4, hw)
    if hw_pad > hw:
        # Only the small gathered tensors get padded (ragged-HW case only; when
        # HW is a multiple of 128 the tile divides HW and this copy is skipped).
        pad = ((0, 0), (0, 0), (0, hw_pad - hw))
        glogits = jnp.pad(glogits, pad)
        boxes = jnp.pad(boxes, pad)

    c_all = compute_cost_matrices(glogits, boxes, recip_img, tnorm, tbox, tile)
    c_all = jax.block_until_ready(c_all)
    c_host = np.asarray(c_all)                     # single device->host transfer

    if validate:
        _validate_against_reference(c_host, outputs, targets)

    indices = []
    for i in range(bs):
        nt = nts[i]
        if nt == 0:
            indices.append((jnp.asarray([], jnp.int32), jnp.asarray([], jnp.int32)))
            continue
        # Padded rows (>= nt) / padded HW columns (>= hw) hold finite garbage by
        # design and are discarded here; nothing reduces over NT_pad in-kernel.
        C = c_host[i, :nt, :hw].T                  # (HW, NT) — original orientation
        src_ind, tgt_ind = linear_sum_assignment(C)
        indices.append((jnp.asarray(src_ind, jnp.int32),
                        jnp.asarray(tgt_ind, jnp.int32)))
    return indices


# ---------------------------------- demo / main --------------------------------------
def _make_boxes(key, n, img_w, img_h):
    k1, k2, k3, k4 = jax.random.split(key, 4)
    cx = jax.random.uniform(k1, (n,), minval=16.0, maxval=img_w - 16.0)
    cy = jax.random.uniform(k2, (n,), minval=16.0, maxval=img_h - 16.0)
    bw = jax.random.uniform(k3, (n,), minval=8.0, maxval=28.0)
    bh = jax.random.uniform(k4, (n,), minval=8.0, maxval=28.0)
    return jnp.stack([cx - bw / 2, cy - bh / 2, cx + bw / 2, cy + bh / 2], axis=-1)


if __name__ == "__main__":
    key = jax.random.PRNGKey(0)
    bs, K, H, W = 2, 4, 16, 16         # small CenterNet-style head
    IMG_W, IMG_H = 128.0, 128.0

    k_logit, k_box, k_t0, k_t1, k_l0, k_l1 = jax.random.split(key, 6)
    pred_logits = jax.random.normal(k_logit, (bs, K, H, W), dtype=jnp.float32)
    # valid xyxy predicted boxes in NCHW layout (bs, 4, H, W)
    flat_boxes = _make_boxes(k_box, bs * H * W, IMG_W, IMG_H)          # (bs*H*W, 4)
    pred_boxes = jnp.transpose(flat_boxes.reshape(bs, H, W, 4), (0, 3, 1, 2))

    img_size_xyxy = jnp.asarray([IMG_W, IMG_H, IMG_W, IMG_H], dtype=jnp.float32)
    nts = [3, 2]
    targets = []
    for kt, kl, nt in [(k_t0, k_l0, nts[0]), (k_t1, k_l1, nts[1])]:
        boxes = _make_boxes(kt, nt, IMG_W, IMG_H)
        labels = jax.random.randint(kl, (nt,), 0, K, dtype=jnp.int32)
        targets.append({
            "labels": labels,
            "boxes_xyxy": boxes,
            "image_size_xyxy": img_size_xyxy,
            "image_size_xyxy_tgt": jnp.tile(img_size_xyxy[None, :], (nt, 1)),
        })

    outputs = {"pred_logits": pred_logits, "pred_boxes": pred_boxes}
    indices = min_cost_matcher_forward(outputs, targets, validate=True)
    for src, tgt in indices:
        jax.block_until_ready(src)
        jax.block_until_ready(tgt)
    print("KERNEL_OK")
</pallas_src>

<mosaic_0001>
module attributes {stable_mosaic.version = 11 : i64} {
  func.func @_cost_kernel(%arg0: i32, %arg1: i32, %arg2: memref<1x8x256xf32, #tpu.memory_space<vmem>>, %arg3: memref<1x4x256xf32, #tpu.memory_space<vmem>>, %arg4: memref<1x4x1xf32, #tpu.memory_space<vmem>>, %arg5: memref<1x8x4xf32, #tpu.memory_space<vmem>>, %arg6: memref<1x8x4xf32, #tpu.memory_space<vmem>>, %arg7: memref<1x8x256xf32, #tpu.memory_space<vmem>>) attributes {dimension_semantics = [#tpu.dimension_semantics<parallel>, #tpu.dimension_semantics<parallel>], iteration_bounds = array<i64: 2, 1>, scalar_prefetch = 0 : i64, scratch_operands = 0 : i64, tpu.core_type = #tpu.core_type<tc>, window_params = [{transform_indices = @transform_0, window_bounds = array<i64: 1, 8, 256>}, {transform_indices = @transform_1, window_bounds = array<i64: 1, 4, 256>}, {transform_indices = @transform_2, window_bounds = array<i64: 1, 4, 1>}, {transform_indices = @transform_3, window_bounds = array<i64: 1, 8, 4>}, {transform_indices = @transform_4, window_bounds = array<i64: 1, 8, 4>}, {transform_indices = @transform_5, window_bounds = array<i64: 1, 8, 256>}]} {
    %c0 = arith.constant 0 : index
    %c0_0 = arith.constant 0 : index
    %c0_1 = arith.constant 0 : index
    %0 = vector.load %arg2[%c0, %c0_0, %c0_1] : memref<1x8x256xf32, #tpu.memory_space<vmem>>, vector<1x8x256xf32>
    %1 = vector.shape_cast %0 : vector<1x8x256xf32> to vector<8x256xf32>
    %2 = arith.negf %1 : vector<8x256xf32>
    %3 = math.exp %2 : vector<8x256xf32>
    %cst = arith.constant 1.000000e+00 : f32
    %4 = vector.broadcast %cst : f32 to vector<8x256xf32>
    %5 = arith.addf %4, %3 : vector<8x256xf32>
    %6 = arith.divf %4, %5 : vector<8x256xf32>
    %cst_2 = arith.constant 1.000000e+00 : f32
    %7 = vector.broadcast %cst_2 : f32 to vector<8x256xf32>
    %8 = arith.subf %7, %6 : vector<8x256xf32>
    %9 = arith.mulf %6, %6 : vector<8x256xf32>
    %cst_3 = arith.constant 7.500000e-01 : f32
    %10 = vector.broadcast %cst_3 : f32 to vector<8x256xf32>
    %11 = arith.mulf %10, %9 : vector<8x256xf32>
    %cst_4 = arith.constant 9.99999993E-9 : f32
    %12 = vector.broadcast %cst_4 : f32 to vector<8x256xf32>
    %13 = arith.addf %8, %12 : vector<8x256xf32>
    %14 = math.log %13 : vector<8x256xf32>
    %cst_5 = arith.constant 0.000000e+00 : f32
    %15 = vector.broadcast %cst_5 : f32 to vector<8x256xf32>
    %16 = arith.subf %15, %14 : vector<8x256xf32>
    %17 = arith.mulf %11, %16 : vector<8x256xf32>
    %18 = arith.mulf %8, %8 : vector<8x256xf32>
    %cst_6 = arith.constant 2.500000e-01 : f32
    %19 = vector.broadcast %cst_6 : f32 to vector<8x256xf32>
    %20 = arith.mulf %19, %18 : vector<8x256xf32>
    %cst_7 = arith.constant 9.99999993E-9 : f32
    %21 = vector.broadcast %cst_7 : f32 to vector<8x256xf32>
    %22 = arith.addf %6, %21 : vector<8x256xf32>
    %23 = math.log %22 : vector<8x256xf32>
    %cst_8 = arith.constant 0.000000e+00 : f32
    %24 = vector.broadcast %cst_8 : f32 to vector<8x256xf32>
    %25 = arith.subf %24, %23 : vector<8x256xf32>
    %26 = arith.mulf %20, %25 : vector<8x256xf32>
    %27 = arith.subf %26, %17 : vector<8x256xf32>
    %c0_9 = arith.constant 0 : index
    %c0_10 = arith.constant 0 : index
    %c0_11 = arith.constant 0 : index
    %28 = vector.load %arg3[%c0_9, %c0_10, %c0_11] : memref<1x4x256xf32, #tpu.memory_space<vmem>>, vector<1x4x256xf32>
    %29 = vector.shape_cast %28 : vector<1x4x256xf32> to vector<4x256xf32>
    %c0_12 = arith.constant 0 : index
    %c0_13 = arith.constant 0 : index
    %c0_14 = arith.constant 0 : index
    %30 = vector.load %arg4[%c0_12, %c0_13, %c0_14] : memref<1x4x1xf32, #tpu.memory_space<vmem>>, vector<1x4x1xf32>
    %31 = vector.shape_cast %30 : vector<1x4x1xf32> to vector<4x1xf32>
    %32 = vector.broadcast %31 : vector<4x1xf32> to vector<4x256xf32>
    %33 = arith.mulf %29, %32 : vector<4x256xf32>
    %34 = vector.extract_strided_slice %29 {offsets = [0, 0], sizes = [1, 256], strides = [1, 1]} : vector<4x256xf32> to vector<1x256xf32>
    %35 = vector.extract_strided_slice %29 {offsets = [1, 0], sizes = [1, 256], strides = [1, 1]} : vector<4x256xf32> to vector<1x256xf32>
    %36 = vector.extract_strided_slice %29 {offsets = [2, 0], sizes = [1, 256], strides = [1, 1]} : vector<4x256xf32> to vector<1x256xf32>
    %37 = vector.extract_strided_slice %29 {offsets = [3, 0], sizes = [1, 256], strides = [1, 1]} : vector<4x256xf32> to vector<1x256xf32>
    %c0_15 = arith.constant 0 : index
    %c0_16 = arith.constant 0 : index
    %c0_17 = arith.constant 0 : index
    %38 = vector.load %arg5[%c0_15, %c0_16, %c0_17] : memref<1x8x4xf32, #tpu.memory_space<vmem>>, vector<1x8x4xf32>
    %39 = vector.shape_cast %38 : vector<1x8x4xf32> to vector<8x4xf32>
    %c0_18 = arith.constant 0 : index
    %c0_19 = arith.constant 0 : index
    %c0_20 = arith.constant 0 : index
    %40 = vector.load %arg6[%c0_18, %c0_19, %c0_20] : memref<1x8x4xf32, #tpu.memory_space<vmem>>, vector<1x8x4xf32>
    %41 = vector.shape_cast %40 : vector<1x8x4xf32> to vector<8x4xf32>
    %42 = vector.extract_strided_slice %41 {offsets = [0, 0], sizes = [8, 1], strides = [1, 1]} : vector<8x4xf32> to vector<8x1xf32>
    %43 = vector.extract_strided_slice %41 {offsets = [0, 1], sizes = [8, 1], strides = [1, 1]} : vector<8x4xf32> to vector<8x1xf32>
    %44 = vector.extract_strided_slice %41 {offsets = [0, 2], sizes = [8, 1], strides = [1, 1]} : vector<8x4xf32> to vector<8x1xf32>
    %45 = vector.extract_strided_slice %41 {offsets = [0, 3], sizes = [8, 1], strides = [1, 1]} : vector<8x4xf32> to vector<8x1xf32>
    %46 = vector.extract_strided_slice %39 {offsets = [0, 0], sizes = [8, 1], strides = [1, 1]} : vector<8x4xf32> to vector<8x1xf32>
    %47 = vector.extract_strided_slice %33 {offsets = [0, 0], sizes = [1, 256], strides = [1, 1]} : vector<4x256xf32> to vector<1x256xf32>
    %48 = vector.broadcast %46 : vector<8x1xf32> to vector<8x256xf32>
    %49 = vector.broadcast %47 : vector<1x256xf32> to vector<8x256xf32>
    %50 = arith.subf %48, %49 : vector<8x256xf32>
    %51 = math.absf %50 : vector<8x256xf32>
    %52 = vector.extract_strided_slice %39 {offsets = [0, 1], sizes = [8, 1], strides = [1, 1]} : vector<8x4xf32> to vector<8x1xf32>
    %53 = vector.extract_strided_slice %33 {offsets = [1, 0], sizes = [1, 256], strides = [1, 1]} : vector<4x256xf32> to vector<1x256xf32>
    %54 = vector.broadcast %52 : vector<8x1xf32> to vector<8x256xf32>
    %55 = vector.broadcast %53 : vector<1x256xf32> to vector<8x256xf32>
    %56 = arith.subf %54, %55 : vector<8x256xf32>
    %57 = math.absf %56 : vector<8x256xf32>
    %58 = arith.addf %51, %57 : vector<8x256xf32>
    %59 = vector.extract_strided_slice %39 {offsets = [0, 2], sizes = [8, 1], strides = [1, 1]} : vector<8x4xf32> to vector<8x1xf32>
    %60 = vector.extract_strided_slice %33 {offsets = [2, 0], sizes = [1, 256], strides = [1, 1]} : vector<4x256xf32> to vector<1x256xf32>
    %61 = vector.broadcast %59 : vector<8x1xf32> to vector<8x256xf32>
    %62 = vector.broadcast %60 : vector<1x256xf32> to vector<8x256xf32>
    %63 = arith.subf %61, %62 : vector<8x256xf32>
    %64 = math.absf %63 : vector<8x256xf32>
    %65 = arith.addf %58, %64 : vector<8x256xf32>
    %66 = vector.extract_strided_slice %39 {offsets = [0, 3], sizes = [8, 1], strides = [1, 1]} : vector<8x4xf32> to vector<8x1xf32>
    %67 = vector.extract_strided_slice %33 {offsets = [3, 0], sizes = [1, 256], strides = [1, 1]} : vector<4x256xf32> to vector<1x256xf32>
    %68 = vector.broadcast %66 : vector<8x1xf32> to vector<8x256xf32>
    %69 = vector.broadcast %67 : vector<1x256xf32> to vector<8x256xf32>
    %70 = arith.subf %68, %69 : vector<8x256xf32>
    %71 = math.absf %70 : vector<8x256xf32>
    %72 = arith.addf %65, %71 : vector<8x256xf32>
    %73 = arith.subf %36, %34 : vector<1x256xf32>
    %74 = arith.subf %37, %35 : vector<1x256xf32>
    %75 = arith.mulf %73, %74 : vector<1x256xf32>
    %76 = arith.subf %44, %42 : vector<8x1xf32>
    %77 = arith.subf %45, %43 : vector<8x1xf32>
    %78 = arith.mulf %76, %77 : vector<8x1xf32>
    %79 = vector.broadcast %36 : vector<1x256xf32> to vector<8x256xf32>
    %80 = vector.broadcast %44 : vector<8x1xf32> to vector<8x256xf32>
    %81 = arith.minimumf %79, %80 : vector<8x256xf32>
    %82 = vector.broadcast %34 : vector<1x256xf32> to vector<8x256xf32>
    %83 = vector.broadcast %42 : vector<8x1xf32> to vector<8x256xf32>
    %84 = arith.maximumf %82, %83 : vector<8x256xf32>
    %85 = arith.subf %81, %84 : vector<8x256xf32>
    %cst_21 = arith.constant 0.000000e+00 : f32
    %86 = vector.broadcast %cst_21 : f32 to vector<8x256xf32>
    %87 = arith.maximumf %85, %86 : vector<8x256xf32>
    %88 = vector.broadcast %37 : vector<1x256xf32> to vector<8x256xf32>
    %89 = vector.broadcast %45 : vector<8x1xf32> to vector<8x256xf32>
    %90 = arith.minimumf %88, %89 : vector<8x256xf32>
    %91 = vector.broadcast %35 : vector<1x256xf32> to vector<8x256xf32>
    %92 = vector.broadcast %43 : vector<8x1xf32> to vector<8x256xf32>
    %93 = arith.maximumf %91, %92 : vector<8x256xf32>
    %94 = arith.subf %90, %93 : vector<8x256xf32>
    %cst_22 = arith.constant 0.000000e+00 : f32
    %95 = vector.broadcast %cst_22 : f32 to vector<8x256xf32>
    %96 = arith.maximumf %94, %95 : vector<8x256xf32>
    %97 = arith.mulf %87, %96 : vector<8x256xf32>
    %98 = vector.broadcast %75 : vector<1x256xf32> to vector<8x256xf32>
    %99 = vector.broadcast %78 : vector<8x1xf32> to vector<8x256xf32>
    %100 = arith.addf %98, %99 : vector<8x256xf32>
    %101 = arith.subf %100, %97 : vector<8x256xf32>
    %102 = vector.broadcast %36 : vector<1x256xf32> to vector<8x256xf32>
    %103 = vector.broadcast %44 : vector<8x1xf32> to vector<8x256xf32>
    %104 = arith.maximumf %102, %103 : vector<8x256xf32>
    %105 = vector.broadcast %34 : vector<1x256xf32> to vector<8x256xf32>
    %106 = vector.broadcast %42 : vector<8x1xf32> to vector<8x256xf32>
    %107 = arith.minimumf %105, %106 : vector<8x256xf32>
    %108 = arith.subf %104, %107 : vector<8x256xf32>
    %cst_23 = arith.constant 0.000000e+00 : f32
    %109 = vector.broadcast %cst_23 : f32 to vector<8x256xf32>
    %110 = arith.maximumf %108, %109 : vector<8x256xf32>
    %111 = vector.broadcast %37 : vector<1x256xf32> to vector<8x256xf32>
    %112 = vector.broadcast %45 : vector<8x1xf32> to vector<8x256xf32>
    %113 = arith.maximumf %111, %112 : vector<8x256xf32>
    %114 = vector.broadcast %35 : vector<1x256xf32> to vector<8x256xf32>
    %115 = vector.broadcast %43 : vector<8x1xf32> to vector<8x256xf32>
    %116 = arith.minimumf %114, %115 : vector<8x256xf32>
    %117 = arith.subf %113, %116 : vector<8x256xf32>
    %cst_24 = arith.constant 0.000000e+00 : f32
    %118 = vector.broadcast %cst_24 : f32 to vector<8x256xf32>
    %119 = arith.maximumf %117, %118 : vector<8x256xf32>
    %120 = arith.mulf %110, %119 : vector<8x256xf32>
    %cst_25 = arith.constant 1.000000e-07 : f32
    %121 = vector.broadcast %cst_25 : f32 to vector<8x256xf32>
    %122 = arith.addf %101, %121 : vector<8x256xf32>
    %123 = arith.divf %97, %122 : vector<8x256xf32>
    %124 = arith.subf %120, %101 : vector<8x256xf32>
    %cst_26 = arith.constant 1.000000e-07 : f32
    %125 = vector.broadcast %cst_26 : f32 to vector<8x256xf32>
    %126 = arith.addf %120, %125 : vector<8x256xf32>
    %127 = arith.divf %124, %126 : vector<8x256xf32>
    %128 = arith.subf %123, %127 : vector<8x256xf32>
    %cst_27 = arith.constant 5.000000e+00 : f32
    %129 = vector.broadcast %cst_27 : f32 to vector<8x256xf32>
    %130 = arith.mulf %129, %72 : vector<8x256xf32>
    %cst_28 = arith.constant 2.000000e+00 : f32
    %131 = vector.broadcast %cst_28 : f32 to vector<8x256xf32>
    %132 = arith.mulf %131, %27 : vector<8x256xf32>
    %133 = arith.addf %130, %132 : vector<8x256xf32>
    %cst_29 = arith.constant 0.000000e+00 : f32
    %134 = vector.broadcast %cst_29 : f32 to vector<8x256xf32>
    %135 = arith.subf %134, %128 : vector<8x256xf32>
    %cst_30 = arith.constant 2.000000e+00 : f32
    %136 = vector.broadcast %cst_30 : f32 to vector<8x256xf32>
    %137 = arith.mulf %136, %135 : vector<8x256xf32>
    %138 = arith.addf %133, %137 : vector<8x256xf32>
    %c0_31 = arith.constant 0 : index
    %c0_32 = arith.constant 0 : index
    %c0_33 = arith.constant 0 : index
    %139 = vector.load %arg7[%c0_31, %c0_32, %c0_33] : memref<1x8x256xf32, #tpu.memory_space<vmem>>, vector<1x8x256xf32>
    %140 = vector.shape_cast %139 : vector<1x8x256xf32> to vector<8x256xf32>
    %141 = vector.shape_cast %138 : vector<8x256xf32> to vector<1x8x256xf32>
    tpu.vector_store %arg7[%c0_31, %c0_32, %c0_33], %141 {strides = array<i32>} : memref<1x8x256xf32, #tpu.memory_space<vmem>>, vector<1x8x256xf32>,
    return
  }
  func.func @transform_0(%arg0: i32, %arg1: i32) -> (i32, i32, i32) {
    %c0_i32 = arith.constant 0 : i32
    %c0_i32_0 = arith.constant 0 : i32
    return %arg0, %c0_i32, %arg1 : i32, i32, i32
  }
  func.func @transform_1(%arg0: i32, %arg1: i32) -> (i32, i32, i32) {
    %c0_i32 = arith.constant 0 : i32
    %c0_i32_0 = arith.constant 0 : i32
    return %arg0, %c0_i32, %arg1 : i32, i32, i32
  }
  func.func @transform_2(%arg0: i32, %arg1: i32) -> (i32, i32, i32) {
    %c0_i32 = arith.constant 0 : i32
    %c0_i32_0 = arith.constant 0 : i32
    %c0_i32_1 = arith.constant 0 : i32
    return %arg0, %c0_i32, %c0_i32_0 : i32, i32, i32
  }
  func.func @transform_3(%arg0: i32, %arg1: i32) -> (i32, i32, i32) {
    %c0_i32 = arith.constant 0 : i32
    %c0_i32_0 = arith.constant 0 : i32
    %c0_i32_1 = arith.constant 0 : i32
    return %arg0, %c0_i32, %c0_i32_0 : i32, i32, i32
  }
  func.func @transform_4(%arg0: i32, %arg1: i32) -> (i32, i32, i32) {
    %c0_i32 = arith.constant 0 : i32
    %c0_i32_0 = arith.constant 0 : i32
    %c0_i32_1 = arith.constant 0 : i32
    return %arg0, %c0_i32, %c0_i32_0 : i32, i32, i32
  }
  func.func @transform_5(%arg0: i32, %arg1: i32) -> (i32, i32, i32) {
    %c0_i32 = arith.constant 0 : i32
    %c0_i32_0 = arith.constant 0 : i32
    return %arg0, %c0_i32, %arg1 : i32, i32, i32
  }
}

</mosaic_0001>

<llo_original>
// kernel: tpu_custom_call.1
$region0: #{tpu_custom_call.1}
  #allocation0 [shape = 'u32[]', space=smem, size = 0x4, offset = 0x4, fixed_abs, tag = 'smem constant byte address 0x4 - core index']
  #allocation1 [shape = 'u32[72,128]{1,0:T(1,128)}', space=vmem, size = 0x9000, scoped, tag = 'internal scratch']
  %s0 = inlined_call_operand.vmem [shape: f32[2,8,256], index: 0, kind: input, shape index: {}]
  %s1 = inlined_call_operand.vmem [shape: f32[2,4,256], index: 1, kind: input, shape index: {}]
  %s2 = inlined_call_operand.vmem [shape: f32[2,4,1], index: 2, kind: input, shape index: {}]
  %s3 = inlined_call_operand.vmem [shape: f32[2,8,4], index: 3, kind: input, shape index: {}]
  %s4 = inlined_call_operand.vmem [shape: f32[2,8,4], index: 4, kind: input, shape index: {}]
  %s5 = inlined_call_operand.hbm [shape: f32[2,8,256], index: 5, kind: output, shape index: {}]
  %s6 = sld [smem:[#allocation0]]
  $region53: #{tpu_custom_call.1} parent=0
    _
  %s8 = ssub.s32 1, %s6
  %s9 = scalar_select 0, %s8, %s6
  $region1: #{tpu_custom_call.1} parent=0
    #allocation2 [shape = 'u8[16384]{0}', space=vmem, size = 0x4000, scoped, tag = 'output window, operand 0']
    #allocation3 [shape = 's32[2]{0}', space=sflag, size = 0x8, scoped, tag = 'scoped memory for tpu_custom_call.1']
    %10 = vsyncpa [#allocation3], 0
    %s11 = scalar_lea.sflag [#allocation3], 1
    %12 = vsyncpa %s11, 0
    loop: start=0, step=1, limit=4
    $region2: #{tpu_custom_call.1} parent=1 // loop_pre_header
      _
    $region3: #{tpu_custom_call.1} parent=1 // loop_header
      %s14 = sphi 0, %s18
      %p15 = scmp.ge.s32.totalorder %s14, 4
      %s21 = sphi 0, %s33
      %s22 = sphi 0, %s29
      %s23 = sphi 0, %s21
      %s24 = sphi 0, %s22
      %s25 = sphi 0, %s23
      %s26 = sphi 0, %s24
      %s38 = sphi 0, %s40
      %s41 = sphi 0, %s38
      %s42 = sphi 0, %s41
      %s58 = sphi 0, %s42
      %s66 = sphi 0, %s68
      %s69 = sphi 0, %s66
      %s70 = sphi 0, %s69
      %s86 = sphi 0, %s70
      %s92 = sphi 0, %s94
      %s95 = sphi 0, %s92
      %s96 = sphi 0, %s95
      %s112 = sphi 0, %s96
      %s118 = sphi 0, %s120
      %s121 = sphi 0, %s118
      %s122 = sphi 0, %s121
      %s138 = sphi 0, %s122
      %s144 = sphi 0, %s146
      %s147 = sphi 0, %s144
      %s148 = sphi 0, %s147
      %s164 = sphi 0, %s148
      %s172 = sphi 0, %s174
      %s175 = sphi 0, %s172
      %s176 = sphi 0, %s175
      %s192 = sphi 0, %s176
    $region4: #{tpu_custom_call.1} parent=1 // loop_header_branch
      %17 = sbr.rel (%p15) target = $region8
    $region5: #{tpu_custom_call.1} parent=1 // loop_body
      %s19 = ssub.s32 %s14, 1
      %s20 = ssub.s32 %s14, 2
      %s27 = sadd.s32 1, %s22
      %p28 = scmp.ge.s32.totalorder %s27, 1
      %s29 = scalar_select %p28, 0, %s27
      %s30 = sadd.s32 1, %s21
      %s31 = scalar_select %p28, %s30, %s21
      %p32 = scmp.ge.s32.totalorder %s31, 2
      %s33 = scalar_select %p32, 0, %s31
      %s34 = ssub.s32 %s21, %s33
      %s35 = ssub.s32 %s22, %s29
      %s36 = sor.u32 %s34, %s35
      %p37 = scmp.eq.s32.totalorder %s36, 0
      %s39 = sadd.s32 %s38, 1
      %s40 = scalar_select %p37, %s38, %s39
      %p43 = pneg %p37
      %p44 = scmp.eq.s32.totalorder %s14, 1
      %p45 = por %p43, %p44
      %p46 = scmp.ne.s32.totalorder %s38, %s41
      %p47 = scmp.eq.s32.totalorder %s14, 0
      %p48 = por %p46, %p47
      %p49 = scmp.ne.s32.totalorder %s38, %s41
      %p50 = scmp.eq.s32.totalorder %s19, 1
      %p51 = por %p49, %p50
      %p52 = scmp.ne.s32.totalorder %s41, %s42
      %p53 = scmp.eq.s32.totalorder %s19, 0
      %p54 = por %p52, %p53
      %p55 = scmp.ne.s32.totalorder %s41, %s42
      %p56 = scmp.eq.s32.totalorder %s20, 1
      %p57 = por %p55, %p56
      %p59 = scmp.ne.s32.totalorder %s42, %s58
      %p60 = scmp.eq.s32.totalorder %s20, 0
      %p61 = por %p59, %p60
      %s62 = ssub.s32 %s21, %s33
      %s63 = ssub.s32 %s22, %s29
      %s64 = sor.u32 %s62, %s63
      %p65 = scmp.eq.s32.totalorder %s64, 0
      %s67 = sadd.s32 %s66, 1
      %s68 = scalar_select %p65, %s66, %s67
      %p71 = pneg %p65
      %p72 = scmp.eq.s32.totalorder %s14, 1
      %p73 = por %p71, %p72
      %p74 = scmp.ne.s32.totalorder %s66, %s69
      %p75 = scmp.eq.s32.totalorder %s14, 0
      %p76 = por %p74, %p75
      %p77 = scmp.ne.s32.totalorder %s66, %s69
      %p78 = scmp.eq.s32.totalorder %s19, 1
      %p79 = por %p77, %p78
      %p80 = scmp.ne.s32.totalorder %s69, %s70
      %p81 = scmp.eq.s32.totalorder %s19, 0
      %p82 = por %p80, %p81
      %p83 = scmp.ne.s32.totalorder %s69, %s70
      %p84 = scmp.eq.s32.totalorder %s20, 1
      %p85 = por %p83, %p84
      %p87 = scmp.ne.s32.totalorder %s70, %s86
      %p88 = scmp.eq.s32.totalorder %s20, 0
      %p89 = por %p87, %p88
      %s90 = ssub.s32 %s21, %s33
      %p91 = scmp.eq.s32.totalorder %s90, 0
      %s93 = sadd.s32 %s92, 1
      %s94 = scalar_select %p91, %s92, %s93
      %p97 = pneg %p91
      %p98 = scmp.eq.s32.totalorder %s14, 1
      %p99 = por %p97, %p98
      %p100 = scmp.ne.s32.totalorder %s92, %s95
      %p101 = scmp.eq.s32.totalorder %s14, 0
      %p102 = por %p100, %p101
      %p103 = scmp.ne.s32.totalorder %s92, %s95
      %p104 = scmp.eq.s32.totalorder %s19, 1
      %p105 = por %p103, %p104
      %p106 = scmp.ne.s32.totalorder %s95, %s96
      %p107 = scmp.eq.s32.totalorder %s19, 0
      %p108 = por %p106, %p107
      %p109 = scmp.ne.s32.totalorder %s95, %s96
      %p110 = scmp.eq.s32.totalorder %s20, 1
      %p111 = por %p109, %p110
      %p113 = scmp.ne.s32.totalorder %s96, %s112
      %p114 = scmp.eq.s32.totalorder %s20, 0
      %p115 = por %p113, %p114
      %s116 = ssub.s32 %s21, %s33
      %p117 = scmp.eq.s32.totalorder %s116, 0
      %s119 = sadd.s32 %s118, 1
      %s120 = scalar_select %p117, %s118, %s119
      %p123 = pneg %p117
      %p124 = scmp.eq.s32.totalorder %s14, 1
      %p125 = por %p123, %p124
      %p126 = scmp.ne.s32.totalorder %s118, %s121
      %p127 = scmp.eq.s32.totalorder %s14, 0
      %p128 = por %p126, %p127
      %p129 = scmp.ne.s32.totalorder %s118, %s121
      %p130 = scmp.eq.s32.totalorder %s19, 1
      %p131 = por %p129, %p130
      %p132 = scmp.ne.s32.totalorder %s121, %s122
      %p133 = scmp.eq.s32.totalorder %s19, 0
      %p134 = por %p132, %p133
      %p135 = scmp.ne.s32.totalorder %s121, %s122
      %p136 = scmp.eq.s32.totalorder %s20, 1
      %p137 = por %p135, %p136
      %p139 = scmp.ne.s32.totalorder %s122, %s138
      %p140 = scmp.eq.s32.totalorder %s20, 0
      %p141 = por %p139, %p140
      %s142 = ssub.s32 %s21, %s33
      %p143 = scmp.eq.s32.totalorder %s142, 0
      %s145 = sadd.s32 %s144, 1
      %s146 = scalar_select %p143, %s144, %s145
      %p149 = pneg %p143
      %p150 = scmp.eq.s32.totalorder %s14, 1
      %p151 = por %p149, %p150
      %p152 = scmp.ne.s32.totalorder %s144, %s147
      %p153 = scmp.eq.s32.totalorder %s14, 0
      %p154 = por %p152, %p153
      %p155 = scmp.ne.s32.totalorder %s144, %s147
      %p156 = scmp.eq.s32.totalorder %s19, 1
      %p157 = por %p155, %p156
      %p158 = scmp.ne.s32.totalorder %s147, %s148
      %p159 = scmp.eq.s32.totalorder %s19, 0
      %p160 = por %p158, %p159
      %p161 = scmp.ne.s32.totalorder %s147, %s148
      %p162 = scmp.eq.s32.totalorder %s20, 1
      %p163 = por %p161, %p162
      %p165 = scmp.ne.s32.totalorder %s148, %s164
      %p166 = scmp.eq.s32.totalorder %s20, 0
      %p167 = por %p165, %p166
      %s168 = ssub.s32 %s21, %s33
      %s169 = ssub.s32 %s22, %s29
      %s170 = sor.u32 %s168, %s169
      %p171 = scmp.eq.s32.totalorder %s170, 0
      %s173 = sadd.s32 %s172, 1
      %s174 = scalar_select %p171, %s172, %s173
      %p177 = pneg %p171
      %p178 = scmp.eq.s32.totalorder %s14, 1
      %p179 = por %p177, %p178
      %p180 = scmp.ne.s32.totalorder %s172, %s175
      %p181 = scmp.eq.s32.totalorder %s14, 0
      %p182 = por %p180, %p181
      %p183 = scmp.ne.s32.totalorder %s172, %s175
      %p184 = scmp.eq.s32.totalorder %s19, 1
      %p185 = por %p183, %p184
      %p186 = scmp.ne.s32.totalorder %s175, %s176
      %p187 = scmp.eq.s32.totalorder %s19, 0
      %p188 = por %p186, %p187
      %p189 = scmp.ne.s32.totalorder %s175, %s176
      %p190 = scmp.eq.s32.totalorder %s20, 1
      %p191 = por %p189, %p190
      %p193 = scmp.ne.s32.totalorder %s176, %s192
      %p194 = scmp.eq.s32.totalorder %s20, 0
      %p195 = por %p193, %p194
      %p196 = scmp.le.s32.totalorder 1, %s14
      %p197 = scmp.lt.s32.totalorder %s14, 3
      %p198 = pnand %p196, %p197
      %p199 = pneg %p198
      // Predicated region
      $region9: #{tpu_custom_call.1} parent=5 // pred_check
        _
      $region10: #{tpu_custom_call.1} parent=5 // pred_check_branch
        %201 = sbr.rel (%p198) target = $region12
      $region11: #{tpu_custom_call.1} parent=5 // pred_region
        %s202 = ssub.s32 %s14, 1
      $region12: #{tpu_custom_call.1} parent=5 // pred_fallthru
        _
      %p203 = scmp.lt.s32.totalorder %s14, 2
      // Predicated region
      $region13: #{tpu_custom_call.1} parent=5 // pred_check
        %p204 = pneg %p203
      $region14: #{tpu_custom_call.1} parent=5 // pred_check_branch
        %206 = sbr.rel (%p204) target = $region16
      $region15: #{tpu_custom_call.1} parent=5 // pred_region
        // Predicated region
        $region17: #{tpu_custom_call.1} parent=15 // pred_check
          %p207 = pneg %p48
        $region18: #{tpu_custom_call.1} parent=15 // pred_check_branch
          %209 = sbr.rel (%p207) target = $region20
        $region19: #{tpu_custom_call.1} parent=15 // pred_region
          %s210 = smul.u32 2, %s22
          %p211 = scmp.lt.s32.totalorder %s21, 1
          %s212 = scalar_select %p211, %s21, 1
          %p213 = scmp.lt.s32.totalorder %s210, 1
          %s214 = scalar_select %p213, %s210, 1
          %s215 = smul.addr %s212, 2
          %s216 = sadd.s32 %s214, %s215
          %s217 = smul.addr %s216, 8
          %s218 = scalar_lea.vmem %s0, %s217
          %s219 = smul.u32 2, %s22
        $region20: #{tpu_custom_call.1} parent=15 // pred_fallthru
          _
        // Predicated region
        $region21: #{tpu_custom_call.1} parent=15 // pred_check
          %p220 = pneg %p76
        $region22: #{tpu_custom_call.1} parent=15 // pred_check_branch
          %222 = sbr.rel (%p220) target = $region24
        $region23: #{tpu_custom_call.1} parent=15 // pred_region
          %s223 = smul.u32 2, %s22
          %p224 = scmp.lt.s32.totalorder %s21, 1
          %s225 = scalar_select %p224, %s21, 1
          %p226 = scmp.lt.s32.totalorder %s223, 1
          %s227 = scalar_select %p226, %s223, 1
          %s228 = smul.addr %s225, 2
          %s229 = sadd.s32 %s227, %s228
          %s230 = smul.addr %s229, 4
          %s231 = scalar_lea.vmem %s1, %s230
          %s232 = smul.u32 2, %s22
        $region24: #{tpu_custom_call.1} parent=15 // pred_fallthru
          _
        // Predicated region
        $region25: #{tpu_custom_call.1} parent=15 // pred_check
          %p233 = pneg %p102
        $region26: #{tpu_custom_call.1} parent=15 // pred_check_branch
          %235 = sbr.rel (%p233) target = $region28
        $region27: #{tpu_custom_call.1} parent=15 // pred_region
          %p236 = scmp.lt.s32.totalorder %s21, 1
          %s237 = scalar_select %p236, %s21, 1
          %s238 = smul.addr %s237, 4
          %s239 = scalar_lea.vmem %s2, %s238
        $region28: #{tpu_custom_call.1} parent=15 // pred_fallthru
          _
        // Predicated region
        $region29: #{tpu_custom_call.1} parent=15 // pred_check
          %p240 = pneg %p128
        $region30: #{tpu_custom_call.1} parent=15 // pred_check_branch
          %242 = sbr.rel (%p240) target = $region32
        $region31: #{tpu_custom_call.1} parent=15 // pred_region
          %p243 = scmp.lt.s32.totalorder %s21, 1
          %s244 = scalar_select %p243, %s21, 1
          %s245 = smul.addr %s244, 8
          %s246 = scalar_lea.vmem %s3, %s245
        $region32: #{tpu_custom_call.1} parent=15 // pred_fallthru
          _
        // Predicated region
        $region33: #{tpu_custom_call.1} parent=15 // pred_check
          %p247 = pneg %p154
        $region34: #{tpu_custom_call.1} parent=15 // pred_check_branch
          %249 = sbr.rel (%p247) target = $region36
        $region35: #{tpu_custom_call.1} parent=15 // pred_region
          %p250 = scmp.lt.s32.totalorder %s21, 1
          %s251 = scalar_select %p250, %s21, 1
          %s252 = smul.addr %s251, 8
          %s253 = scalar_lea.vmem %s4, %s252
        $region36: #{tpu_custom_call.1} parent=15 // pred_fallthru
          _
      $region16: #{tpu_custom_call.1} parent=5 // pred_fallthru
        _
      %p254 = scmp.le.s32.totalorder 1, %s14
      %p255 = scmp.lt.s32.totalorder %s14, 3
      %p256 = pnand %p254, %p255
      %p257 = pneg %p256
      // Predicated region
      $region37: #{tpu_custom_call.1} parent=5 // pred_check
        _
      $region38: #{tpu_custom_call.1} parent=5 // pred_check_branch
        %259 = sbr.rel (%p256) target = $region40
      $region39: #{tpu_custom_call.1} parent=5 // pred_region
        %s260 = ssub.s32 %s14, 1
        %s261 = smul.u32 2, %s24
        %p262 = scmp.lt.s32.totalorder %s23, 1
        %s263 = scalar_select %p262, %s23, 1
        %p264 = scmp.lt.s32.totalorder %s261, 1
        %s265 = scalar_select %p264, %s261, 1
        %s266 = smul.addr %s263, 2
        %s267 = sadd.s32 %s265, %s266
        %s268 = smul.addr %s267, 8
        %s269 = scalar_lea.vmem %s0, %s268
        %p270 = pneg %p54
        %p271 = pneg %p51
        %s272 = smul.u32 2, %s24
        %p273 = scmp.lt.s32.totalorder %s23, 1
        %s274 = scalar_select %p273, %s23, 1
        %p275 = scmp.lt.s32.totalorder %s272, 1
        %s276 = scalar_select %p275, %s272, 1
        %s277 = smul.addr %s274, 2
        %s278 = sadd.s32 %s276, %s277
        %s279 = smul.addr %s278, 4
        %s280 = scalar_lea.vmem %s1, %s279
        %p281 = pneg %p82
        %p282 = pneg %p79
        %p283 = scmp.lt.s32.totalorder %s23, 1
        %s284 = scalar_select %p283, %s23, 1
        %s285 = smul.addr %s284, 4
        %s286 = scalar_lea.vmem %s2, %s285
        %p287 = pneg %p108
        %p288 = pneg %p105
        %p289 = scmp.lt.s32.totalorder %s23, 1
        %s290 = scalar_select %p289, %s23, 1
        %s291 = smul.addr %s290, 8
        %s292 = scalar_lea.vmem %s3, %s291
        %p293 = pneg %p134
        %p294 = pneg %p131
        %p295 = scmp.lt.s32.totalorder %s23, 1
        %s296 = scalar_select %p295, %s23, 1
        %s297 = smul.addr %s296, 8
        %s298 = scalar_lea.vmem %s4, %s297
        %p299 = pneg %p160
        %p300 = pneg %p157
        %p301 = pneg %p188
        %p302 = pneg %p185
        %s303 = sand.u32 %s175, 1
        %s304 = scalar_lea.sflag [#allocation3], %s303
        %s305 = sand.u32 %s175, 1
        %s306 = smul.addr %s305, 16
        %s307 = scalar_lea.vmem [#allocation2], %s306
        %s308 = smul.u32 2, %s24
        %p309 = scmp.lt.s32.totalorder %s23, 1
        %s310 = scalar_select %p309, %s23, 1
        %p311 = scmp.lt.s32.totalorder %s308, 1
        %s312 = scalar_select %p311, %s308, 1
        %s313 = smul.addr %s310, 2
        %s314 = sadd.s32 %s312, %s313
        %s315 = smul.addr %s314, 8
        %s316 = scalar_lea.vmem %s0, %s315
        %s317 = smul.u32 2, %s24
        %s318 = smul.u32 2, %s24
        %p319 = scmp.lt.s32.totalorder %s23, 1
        %s320 = scalar_select %p319, %s23, 1
        %p321 = scmp.lt.s32.totalorder %s318, 1
        %s322 = scalar_select %p321, %s318, 1
        %s323 = smul.addr %s320, 2
        %s324 = sadd.s32 %s322, %s323
        %s325 = smul.addr %s324, 4
        %s326 = scalar_lea.vmem %s1, %s325
        %s327 = smul.u32 2, %s24
        %p328 = scmp.lt.s32.totalorder %s23, 1
        %s329 = scalar_select %p328, %s23, 1
        %s330 = smul.addr %s329, 4
        %s331 = scalar_lea.vmem %s2, %s330
        %p332 = scmp.lt.s32.totalorder %s23, 1
        %s333 = scalar_select %p332, %s23, 1
        %s334 = smul.addr %s333, 8
        %s335 = scalar_lea.vmem %s3, %s334
        %p336 = scmp.lt.s32.totalorder %s23, 1
        %s337 = scalar_select %p336, %s23, 1
        %s338 = smul.addr %s337, 8
        %s339 = scalar_lea.vmem %s4, %s338
        %s340 = smul.u32 2, %s24
        %v341 = vld [vmem:[%s316] sm:$0xff]
        %v342 = vld [vmem:[%s316 + $0x8] sm:$0xff]
        %v343 = vxor.u32 %v341, 2147483648
        %v344 = vxor.u32 %v342, 2147483648
        %v345 = vmul.f32 %v343, 1.442695
        %v346 = vpow.pop %v345
        %v347 = vmul.f32 %v344, 1.442695
        %v348 = vpow.pop %v347
        %v349 = vadd.f32 %v346, 1.0
        %v350 = vadd.f32 %v348, 1.0
        %v351 = vrcp.pop %v349
        %v352 = vmul.f32 %v349, %v351
        %v353 = vsub.f32 1.0, %v352
        %v354 = vmul.f32 %v351, %v353
        %v355 = vadd.f32 %v351, %v354
        %vm356 = vweird.f32 %v349
        %vm357 = vweird.f32 %v351
        %vm358 = vmor %vm356, %vm357
        %v359 = vsel %vm358, %v351, %v355
        %v360 = vand.u32 2147483647, %v349
        %vm361 = vcmp.eq.f32.partialorder %v360, 8.507059e+37
        %v362 = vand.u32 %v349, 2147483648
        %v363 = vor.u32 1.1754944e-38, %v362
        %v364 = vsel %vm361, %v363, %v359
        %v365 = vmul.f32 1.0, %v364
        %v366 = vrcp.pop %v350
        %v367 = vmul.f32 %v350, %v366
        %v368 = vsub.f32 1.0, %v367
        %v369 = vmul.f32 %v366, %v368
        %v370 = vadd.f32 %v366, %v369
        %vm371 = vweird.f32 %v350
        %vm372 = vweird.f32 %v366
        %vm373 = vmor %vm371, %vm372
        %v374 = vsel %vm373, %v366, %v370
        %v375 = vand.u32 2147483647, %v350
        %vm376 = vcmp.eq.f32.partialorder %v375, 8.507059e+37
        %v377 = vand.u32 %v350, 2147483648
        %v378 = vor.u32 1.1754944e-38, %v377
        %v379 = vsel %vm376, %v378, %v374
        %v380 = vmul.f32 1.0, %v379
        %v381 = vsub.f32 1.0, %v365
        %v382 = vsub.f32 1.0, %v380
        %v383 = vmul.f32 %v365, %v365
        %v384 = vmul.f32 %v380, %v380
        %v385 = vmul.f32 %v383, 0.75
        %v386 = vmul.f32 %v384, 0.75
        %v387 = vadd.f32 %v381, 1e-08
        %v388 = vadd.f32 %v382, 1e-08
        %v389 = vlog2.pop %v387
        %v390 = vmul.f32 %v389, 0.6931472
        %v391 = vlog2.pop %v388
        %v392 = vmul.f32 %v391, 0.6931472
        %v393 = vsub.f32 0.0, %v390
        %v394 = vsub.f32 0.0, %v392
        %v395 = vmul.f32 %v385, %v393
        %v396 = vmul.f32 %v386, %v394
        %v397 = vmul.f32 %v381, %v381
        %v398 = vmul.f32 %v382, %v382
        %v399 = vmul.f32 %v397, 0.25
        %v400 = vmul.f32 %v398, 0.25
        %v401 = vadd.f32 %v365, 1e-08
        %v402 = vadd.f32 %v380, 1e-08
        %v403 = vlog2.pop %v401
        %v404 = vmul.f32 %v403, 0.6931472
        %v405 = vlog2.pop %v402
        %v406 = vmul.f32 %v405, 0.6931472
        %v407 = vsub.f32 0.0, %v404
        %v408 = vsub.f32 0.0, %v406
        %v409 = vmul.f32 %v399, %v407
        %v410 = vmul.f32 %v400, %v408
        %v411 = vsub.f32 %v409, %v395
        %v412 = vsub.f32 %v410, %v396
        %v413 = vld [vmem:[%s326] sm:$0xff]
        %v414 = vld [vmem:[%s331] sm:$0xf]
        %416 = vset.pattern.permute.xlu0 0
        %417 = vperm.xlu0 %416, %v414
        %v418 = vpop.permute.xlu0 %417
        %v420 = vunpack.c.l.s4 839922192
        %v421 = vunpack.c.0.s8 %v420
        %v422 = vperm.slane %v418, %v421
        %v424 = vmul.f32 %v413, %v422
        %v425 = vld [vmem:[%s335] sm:$0xff]
        %v426 = vld [vmem:[%s339] sm:$0xff]
        %428 = vset.pattern.permute.xlu0 0
        %429 = vperm.xlu0 %428, %v425
        %v430 = vpop.permute.xlu0 %429
        %v433 = vperm.slane %v424, 0
        %v434 = vperm.slane %v424, 4
        %v437 = vperm.slane %v433, 0
        %v438 = vperm.slane %v434, 0
        %v439 = vsub.f32 %v430, %v437
        %v440 = vsub.f32 %v430, %v438
        %v441 = vand.u32 2147483647, %v439
        %v442 = vand.u32 2147483647, %v440
        %443 = vset.pattern.permute.xlu0 1
        %444 = vperm.xlu0 %443, %v425
        %v445 = vpop.permute.xlu0 %444
        %v447 = vperm.slane %v424, 1
        %v448 = vperm.slane %v424, 5
        %v451 = vperm.slane %v447, 1
        %v452 = vperm.slane %v448, 1
        %v453 = vsub.f32 %v445, %v451
        %v454 = vsub.f32 %v445, %v452
        %v455 = vand.u32 2147483647, %v453
        %v456 = vand.u32 2147483647, %v454
        %v457 = vadd.f32 %v441, %v455
        %v458 = vadd.f32 %v442, %v456
        %459 = vset.pattern.permute.xlu0 2
        %460 = vperm.xlu0 %459, %v425
        %v461 = vpop.permute.xlu0 %460
        %v463 = vperm.slane %v424, 2
        %v464 = vperm.slane %v424, 6
        %v467 = vperm.slane %v463, 2
        %v468 = vperm.slane %v464, 2
        %v469 = vsub.f32 %v461, %v467
        %v470 = vsub.f32 %v461, %v468
        %v471 = vand.u32 2147483647, %v469
        %v472 = vand.u32 2147483647, %v470
        %v473 = vadd.f32 %v457, %v471
        %v474 = vadd.f32 %v458, %v472
        %475 = vset.pattern.permute.xlu0 3
        %476 = vperm.xlu0 %475, %v425
        %v477 = vpop.permute.xlu0 %476
        %v479 = vperm.slane %v424, 3
        %v480 = vperm.slane %v424, 7
        %v483 = vperm.slane %v479, 3
        %v484 = vperm.slane %v480, 3
        %v485 = vsub.f32 %v477, %v483
        %v486 = vsub.f32 %v477, %v484
        %v487 = vand.u32 2147483647, %v485
        %v488 = vand.u32 2147483647, %v486
        %v489 = vadd.f32 %v473, %v487
        %v490 = vadd.f32 %v474, %v488
        %v492 = vrot.slane %v413, 6
        %v494 = vsub.f32 %v413, %v492
        %v496 = vrot.slane %v494, 5
        %v497 = vrot.slane %v496, 4
        %v499 = vmul.f32 %v494, %v497
        %501 = vrot.lane.b32.xlu0 %v426, 2
        %v502 = vpop.permute.xlu0 %501
        %v504 = vsub.f32 %v426, %v502
        %506 = vrot.lane.b32.xlu0 %v504, 127
        %v507 = vpop.permute.xlu0 %506
        %v509 = vmul.f32 %v504, %v507
        %v510 = vperm.slane %v413, 2
        %v511 = vperm.slane %v413, 6
        %v514 = vperm.slane %v510, 2
        %v515 = vperm.slane %v511, 2
        %516 = vset.pattern.permute.xlu0 2
        %517 = vperm.xlu0 %516, %v426
        %v518 = vpop.permute.xlu0 %517
        %v520 = vmin.f32 %v514, %v518
        %v521 = vmin.f32 %v515, %v518
        %v522 = vperm.slane %v413, 0
        %v523 = vperm.slane %v413, 4
        %v526 = vperm.slane %v522, 0
        %v527 = vperm.slane %v523, 0
        %528 = vset.pattern.permute.xlu0 0
        %529 = vperm.xlu0 %528, %v426
        %v530 = vpop.permute.xlu0 %529
        %v532 = vmax.f32 %v526, %v530
        %v533 = vmax.f32 %v527, %v530
        %v534 = vsub.f32 %v520, %v532
        %v535 = vsub.f32 %v521, %v533
        %v536 = vmax.f32 %v534, 0.0
        %v537 = vmax.f32 %v535, 0.0
        %v538 = vperm.slane %v413, 3
        %v539 = vperm.slane %v413, 7
        %v542 = vperm.slane %v538, 3
        %v543 = vperm.slane %v539, 3
        %544 = vset.pattern.permute.xlu0 3
        %545 = vperm.xlu0 %544, %v426
        %v546 = vpop.permute.xlu0 %545
        %v548 = vmin.f32 %v542, %v546
        %v549 = vmin.f32 %v543, %v546
        %v550 = vperm.slane %v413, 1
        %v551 = vperm.slane %v413, 5
        %v554 = vperm.slane %v550, 1
        %v555 = vperm.slane %v551, 1
        %556 = vset.pattern.permute.xlu0 1
        %557 = vperm.xlu0 %556, %v426
        %v558 = vpop.permute.xlu0 %557
        %v560 = vmax.f32 %v554, %v558
        %v561 = vmax.f32 %v555, %v558
        %v562 = vsub.f32 %v548, %v560
        %v563 = vsub.f32 %v549, %v561
        %v564 = vmax.f32 %v562, 0.0
        %v565 = vmax.f32 %v563, 0.0
        %v566 = vmul.f32 %v536, %v564
        %v567 = vmul.f32 %v537, %v565
        %v569 = vperm.slane %v499, 2
        %v570 = vperm.slane %v499, 6
        %v573 = vperm.slane %v569, 2
        %v574 = vperm.slane %v570, 2
        %576 = vset.pattern.permute.xlu0 2
        %577 = vperm.xlu0 %576, %v509
        %v578 = vpop.permute.xlu0 %577
        %v580 = vadd.f32 %v573, %v578
        %v581 = vadd.f32 %v574, %v578
        %v582 = vsub.f32 %v580, %v566
        %v583 = vsub.f32 %v581, %v567
        %v584 = vmax.f32 %v514, %v518
        %v585 = vmax.f32 %v515, %v518
        %v586 = vmin.f32 %v526, %v530
        %v587 = vmin.f32 %v527, %v530
        %v588 = vsub.f32 %v584, %v586
        %v589 = vsub.f32 %v585, %v587
        %v590 = vmax.f32 %v588, 0.0
        %v591 = vmax.f32 %v589, 0.0
        %v592 = vmax.f32 %v542, %v546
        %v593 = vmax.f32 %v543, %v546
        %v594 = vmin.f32 %v554, %v558
        %v595 = vmin.f32 %v555, %v558
        %v596 = vsub.f32 %v592, %v594
        %v597 = vsub.f32 %v593, %v595
        %v598 = vmax.f32 %v596, 0.0
        %v599 = vmax.f32 %v597, 0.0
        %v600 = vmul.f32 %v590, %v598
        %v601 = vmul.f32 %v591, %v599
        %v602 = vadd.f32 %v582, 1e-07
        %v603 = vadd.f32 %v583, 1e-07
        %v604 = vrcp.pop %v602
        %v605 = vmul.f32 %v602, %v604
        %v606 = vsub.f32 1.0, %v605
        %v607 = vmul.f32 %v604, %v606
        %v608 = vadd.f32 %v604, %v607
        %vm609 = vweird.f32 %v602
        %vm610 = vweird.f32 %v604
        %vm611 = vmor %vm609, %vm610
        %v612 = vsel %vm611, %v604, %v608
        %v613 = vand.u32 2147483647, %v602
        %vm614 = vcmp.eq.f32.partialorder %v613, 8.507059e+37
        %v615 = vand.u32 %v602, 2147483648
        %v616 = vor.u32 1.1754944e-38, %v615
        %v617 = vsel %vm614, %v616, %v612
        %v618 = vmul.f32 %v566, %v617
        %v619 = vrcp.pop %v603
        %v620 = vmul.f32 %v603, %v619
        %v621 = vsub.f32 1.0, %v620
        %v622 = vmul.f32 %v619, %v621
        %v623 = vadd.f32 %v619, %v622
        %vm624 = vweird.f32 %v603
        %vm625 = vweird.f32 %v619
        %vm626 = vmor %vm624, %vm625
        %v627 = vsel %vm626, %v619, %v623
        %v628 = vand.u32 2147483647, %v603
        %vm629 = vcmp.eq.f32.partialorder %v628, 8.507059e+37
        %v630 = vand.u32 %v603, 2147483648
        %v631 = vor.u32 1.1754944e-38, %v630
        %v632 = vsel %vm629, %v631, %v627
        %v633 = vmul.f32 %v567, %v632
        %v634 = vsub.f32 %v600, %v582
        %v635 = vsub.f32 %v601, %v583
        %v636 = vadd.f32 %v600, 1e-07
        %v637 = vadd.f32 %v601, 1e-07
        %v638 = vrcp.pop %v636
        %v639 = vmul.f32 %v636, %v638
        %v640 = vsub.f32 1.0, %v639
        %v641 = vmul.f32 %v638, %v640
        %v642 = vadd.f32 %v638, %v641
        %vm643 = vweird.f32 %v636
        %vm644 = vweird.f32 %v638
        %vm645 = vmor %vm643, %vm644
        %v646 = vsel %vm645, %v638, %v642
        %v647 = vand.u32 2147483647, %v636
        %vm648 = vcmp.eq.f32.partialorder %v647, 8.507059e+37
        %v649 = vand.u32 %v636, 2147483648
        %v650 = vor.u32 1.1754944e-38, %v649
        %v651 = vsel %vm648, %v650, %v646
        %v652 = vmul.f32 %v634, %v651
        %v653 = vrcp.pop %v637
        %v654 = vmul.f32 %v637, %v653
        %v655 = vsub.f32 1.0, %v654
        %v656 = vmul.f32 %v653, %v655
        %v657 = vadd.f32 %v653, %v656
        %vm658 = vweird.f32 %v637
        %vm659 = vweird.f32 %v653
        %vm660 = vmor %vm658, %vm659
        %v661 = vsel %vm660, %v653, %v657
        %v662 = vand.u32 2147483647, %v637
        %vm663 = vcmp.eq.f32.partialorder %v662, 8.507059e+37
        %v664 = vand.u32 %v637, 2147483648
        %v665 = vor.u32 1.1754944e-38, %v664
        %v666 = vsel %vm663, %v665, %v661
        %v667 = vmul.f32 %v635, %v666
        %v668 = vsub.f32 %v618, %v652
        %v669 = vsub.f32 %v633, %v667
        %v670 = vmul.f32 %v489, 5.0
        %v671 = vmul.f32 %v490, 5.0
        %v672 = vmul.f32 %v411, 2.0
        %v673 = vmul.f32 %v412, 2.0
        %v674 = vadd.f32 %v670, %v672
        %v675 = vadd.f32 %v671, %v673
        %v676 = vsub.f32 0.0, %v668
        %v677 = vsub.f32 0.0, %v669
        %v678 = vmul.f32 %v676, 2.0
        %v679 = vmul.f32 %v677, 2.0
        %v680 = vadd.f32 %v674, %v678
        %v681 = vadd.f32 %v675, %v679
        %682 = vst [vmem:[%s307] sm:$0xff] %v680
        %683 = vst [vmem:[%s307 + $0x8] sm:$0xff] %v681
        %s684 = sand.u32 %s175, 1
        %s685 = scalar_lea.sflag [#allocation3], %s684
        %s686 = sand.u32 %s175, 1
        %s687 = smul.addr %s686, 16
        %s688 = scalar_lea.vmem [#allocation2], %s687
        // Predicated region
        $region41: #{tpu_custom_call.1} parent=39 // pred_check
          %p689 = pneg %p185
        $region42: #{tpu_custom_call.1} parent=39 // pred_check_branch
          %691 = sbr.rel (%p689) target = $region44
        $region43: #{tpu_custom_call.1} parent=39 // pred_region
          %s692 = smul.u32 2, %s24
          %694 = vsyncadd %s685, 0
          %s695 = smul.addr %s23, 2
          %s696 = sadd.s32 %s692, %s695
          %s697 = smul.addr %s696, 8
          %s698 = scalar_lea.hbm %s5, %s697
          %s700 = sshll.u32 %s688, 4
          %s701 = int_to_ptr.vmem [resolvable:$true] %s700
          %s702 = sshll.u32 %s698, 4
          %s703 = int_to_ptr.hbm [resolvable:$true] %s702
          %705 = dma.vmem_to_hbm [thread:$0]  %s701, 256, %s703, %s685
        $region44: #{tpu_custom_call.1} parent=39 // pred_fallthru
          _
      $region40: #{tpu_custom_call.1} parent=5 // pred_fallthru
        _
      %p706 = scmp.le.s32.totalorder 2, %s14
      // Predicated region
      $region45: #{tpu_custom_call.1} parent=5 // pred_check
        %p707 = pneg %p706
      $region46: #{tpu_custom_call.1} parent=5 // pred_check_branch
        %709 = sbr.rel (%p707) target = $region48
      $region47: #{tpu_custom_call.1} parent=5 // pred_region
        %s710 = ssub.s32 %s14, 2
        // Predicated region
        $region49: #{tpu_custom_call.1} parent=47 // pred_check
          %p711 = pneg %p191
        $region50: #{tpu_custom_call.1} parent=47 // pred_check_branch
          %713 = sbr.rel (%p711) target = $region52
        $region51: #{tpu_custom_call.1} parent=47 // pred_region
          %s714 = sand.u32 %s176, 1
          %s715 = scalar_lea.sflag [#allocation3], %s714
          %s716 = sand.u32 %s176, 1
          %s717 = smul.addr %s716, 16
          %s718 = scalar_lea.vmem [#allocation2], %s717
          %720 = dma.done %s715, 256
        $region52: #{tpu_custom_call.1} parent=47 // pred_fallthru
          _
      $region48: #{tpu_custom_call.1} parent=5 // pred_fallthru
        _
    $region6: #{tpu_custom_call.1} parent=1 // loop_footer
      %s18 = sadd.s32 1, %s14
    $region7: #{tpu_custom_call.1} parent=1 // loop_footer_branch
      %13 = sbr.rel target = $region3
    $region8: #{tpu_custom_call.1} parent=1 // loop_exit
      _
    %721 = vsyncpa [#allocation3], 1
    %s722 = scalar_lea.sflag [#allocation3], 1
    %723 = vsyncpa %s722, 1

</llo_original>
